<compile_context>
chip_gen: v5e
topology: v5e:2x2
jax: 0.10.0
libtpu: 0.0.40
codegen_flags: <defaults>
</compile_context>

<pallas_src>
import functools

import jax
import jax.numpy as jnp
from jax.experimental import pallas as pl
from jax.experimental.pallas import tpu as pltpu

_LANE = 128
_SUBLANE = 8
_QUANTUM = _SUBLANE * _LANE          # 1024 elements: keeps every segment 8-row aligned
_TILE_ROWS = 2048                    # 2048 x 128 f32 = 1 MiB per block

_LAMBDS = (0.5, 0.1, 0.22, 0.0)      # F.hardshrink default is 0.5


# ---------------------------------------------------------------------------
# kernel
# ---------------------------------------------------------------------------
def _hardshrink_kernel(x_ref, o_ref, *, block_rows, bounds, lambds):
    """Elementwise 2*x-1 followed by hardshrink with a per-row-segment lambda.

    `bounds` are static cumulative row boundaries of the packed segments,
    `lambds` the matching compile-time thresholds.
    """
    base = pl.program_id(0) * block_rows
    row = base + jax.lax.broadcasted_iota(jnp.int32, x_ref.shape, 0)

    v = x_ref[...] * 2.0 - 1.0

    # Static select chain: row < bounds[i] -> lambds[i].
    lam = jnp.full(v.shape, lambds[-1], dtype=v.dtype)
    for b, l in zip(reversed(bounds[:-1]), reversed(lambds[:-1])):
        lam = jnp.where(row < b, jnp.asarray(l, v.dtype), lam)

    o_ref[...] = jnp.where(jnp.abs(v) > lam, v, 0.0)


# ---------------------------------------------------------------------------
# layout glue (pure JAX, outside the kernel)
# ---------------------------------------------------------------------------
def _pack(inputs):
    """Pack all inputs into one lane-dense (rows, 128) slab, rows % 8 == 0."""
    flats = []
    bounds = []          # cumulative row boundary per segment (static ints)
    spans = []           # (flat element offset, element count) per input
    row_off = 0
    for a in inputs:
        n = a.size
        padded = ((n + _QUANTUM - 1) // _QUANTUM) * _QUANTUM
        flat = a.reshape(-1)
        if padded != n:
            flat = jnp.pad(flat, (0, padded - n))
        flats.append(flat)
        spans.append((row_off * _LANE, n))
        row_off += padded // _LANE
        bounds.append(row_off)
    slab = jnp.concatenate(flats).reshape(row_off, _LANE)
    return slab, tuple(bounds), tuple(spans)


# ---------------------------------------------------------------------------
# pallas_call wrapper
# ---------------------------------------------------------------------------
def _run(slab, bounds, lambds):
    rows = slab.shape[0]                       # always a multiple of 8
    block_rows = min(_TILE_ROWS, rows)         # multiple of 8 -> (8,128) OK
    grid = (pl.cdiv(rows, block_rows),)
    return pl.pallas_call(
        functools.partial(_hardshrink_kernel,
                          block_rows=block_rows, bounds=bounds, lambds=lambds),
        out_shape=jax.ShapeDtypeStruct(slab.shape, slab.dtype),
        grid=grid,
        in_specs=[pl.BlockSpec((block_rows, _LANE), lambda i: (i, 0))],
        out_specs=pl.BlockSpec((block_rows, _LANE), lambda i: (i, 0)),
        input_output_aliases={0: 0},
        compiler_params=pltpu.CompilerParams(
            dimension_semantics=("parallel",)),
    )(slab)


# ---------------------------------------------------------------------------
# model forward
# ---------------------------------------------------------------------------
def model_forward(x, y, z, w):
    """Mirrors Model.forward exactly (returns a 4-tuple)."""
    inputs = (x, y, z, w)
    slab, bounds, spans = _pack(inputs)
    out_slab = _run(slab, bounds, _LAMBDS)
    flat = out_slab.reshape(-1)
    return tuple(flat[off:off + n].reshape(a.shape)
                 for (off, n), a in zip(spans, inputs))


model_forward_jit = jax.jit(model_forward)


def _ref(v, lambd):
    # pure-JAX reference of hardshrink(v*2-1, lambd)
    v = v * 2.0 - 1.0
    return jnp.where(jnp.abs(v) > lambd, v, 0.0)


if __name__ == "__main__":
    key = jax.random.PRNGKey(0)
    k1, k2, k3, k4 = jax.random.split(key, 4)

    # small shapes mirroring the pnnx test (uniform [0,1) like torch.rand)
    x = jax.random.uniform(k1, (1, 16), dtype=jnp.float32)
    y = jax.random.uniform(k2, (12, 2, 16), dtype=jnp.float32)
    z = jax.random.uniform(k3, (1, 3, 12, 16), dtype=jnp.float32)
    w = jax.random.uniform(k4, (1, 5, 7, 9, 11), dtype=jnp.float32)

    outs = model_forward_jit(x, y, z, w)
    outs = jax.block_until_ready(outs)

    refs = (_ref(x, 0.5), _ref(y, 0.1), _ref(z, 0.22), _ref(w, 0.0))

    for o, r in zip(outs, refs):
        assert o.shape == r.shape and o.dtype == r.dtype
        assert jnp.allclose(o, r, atol=1e-6), "mismatch vs reference"

    print("KERNEL_OK")
</pallas_src>

<mosaic_0001>
module attributes {stable_mosaic.version = 11 : i64} {
  func.func @_hardshrink_kernel(%arg0: i32, %arg1: memref<56x128xf32, #tpu.memory_space<vmem>>, %arg2: memref<56x128xf32, #tpu.memory_space<vmem>>) attributes {dimension_semantics = [#tpu.dimension_semantics<parallel>], iteration_bounds = array<i64: 1>, scalar_prefetch = 0 : i64, scratch_operands = 0 : i64, tpu.core_type = #tpu.core_type<tc>, window_params = [{transform_indices = @transform_0, window_bounds = array<i64: 56, 128>}, {transform_indices = @transform_1, window_bounds = array<i64: 56, 128>}]} {
    %c56_i32 = arith.constant 56 : i32
    %0 = arith.muli %arg0, %c56_i32 : i32
    %1 = tpu.iota {dimensions = array<i32: 0>} : vector<56x128xi32>
    %2 = vector.broadcast %0 : i32 to vector<56x128xi32>
    %3 = arith.addi %2, %1 : vector<56x128xi32>
    %c0 = arith.constant 0 : index
    %c0_0 = arith.constant 0 : index
    %4 = vector.load %arg1[%c0, %c0_0] : memref<56x128xf32, #tpu.memory_space<vmem>>, vector<56x128xf32>
    %cst = arith.constant 2.000000e+00 : f32
    %5 = vector.broadcast %cst : f32 to vector<56x128xf32>
    %6 = arith.mulf %4, %5 : vector<56x128xf32>
    %cst_1 = arith.constant 1.000000e+00 : f32
    %7 = vector.broadcast %cst_1 : f32 to vector<56x128xf32>
    %8 = arith.subf %6, %7 : vector<56x128xf32>
    %cst_2 = arith.constant 0.000000e+00 : f32
    %9 = vector.broadcast %cst_2 : f32 to vector<56x128xf32>
    %c24_i32 = arith.constant 24 : i32
    %10 = vector.broadcast %c24_i32 : i32 to vector<56x128xi32>
    %11 = arith.cmpi slt, %3, %10 : vector<56x128xi32>
    %cst_3 = arith.constant 2.200000e-01 : f32
    %12 = vector.broadcast %cst_3 : f32 to vector<56x128xf32>
    %13 = arith.select %11, %12, %9 : vector<56x128xi1>, vector<56x128xf32>
    %c16_i32 = arith.constant 16 : i32
    %14 = vector.broadcast %c16_i32 : i32 to vector<56x128xi32>
    %15 = arith.cmpi slt, %3, %14 : vector<56x128xi32>
    %cst_4 = arith.constant 1.000000e-01 : f32
    %16 = vector.broadcast %cst_4 : f32 to vector<56x128xf32>
    %17 = arith.select %15, %16, %13 : vector<56x128xi1>, vector<56x128xf32>
    %c8_i32 = arith.constant 8 : i32
    %18 = vector.broadcast %c8_i32 : i32 to vector<56x128xi32>
    %19 = arith.cmpi slt, %3, %18 : vector<56x128xi32>
    %cst_5 = arith.constant 5.000000e-01 : f32
    %20 = vector.broadcast %cst_5 : f32 to vector<56x128xf32>
    %21 = arith.select %19, %20, %17 : vector<56x128xi1>, vector<56x128xf32>
    %22 = math.absf %8 : vector<56x128xf32>
    %23 = arith.cmpf ogt, %22, %21 : vector<56x128xf32>
    %cst_6 = arith.constant 0.000000e+00 : f32
    %24 = vector.broadcast %cst_6 : f32 to vector<56x128xf32>
    %25 = arith.select %23, %8, %24 : vector<56x128xi1>, vector<56x128xf32>
    %c0_7 = arith.constant 0 : index
    %c0_8 = arith.constant 0 : index
    %26 = vector.load %arg2[%c0_7, %c0_8] : memref<56x128xf32, #tpu.memory_space<vmem>>, vector<56x128xf32>
    tpu.vector_store %arg2[%c0_7, %c0_8], %25 {strides = array<i32>} : memref<56x128xf32, #tpu.memory_space<vmem>>, vector<56x128xf32>,
    return
  }
  func.func @transform_0(%arg0: i32) -> (i32, i32) {
    %c0_i32 = arith.constant 0 : i32
    %c0_i32_0 = arith.constant 0 : i32
    return %arg0, %c0_i32 : i32, i32
  }
  func.func @transform_1(%arg0: i32) -> (i32, i32) {
    %c0_i32 = arith.constant 0 : i32
    %c0_i32_0 = arith.constant 0 : i32
    return %arg0, %c0_i32 : i32, i32
  }
}

</mosaic_0001>

<llo_original>
// kernel: model_forward.1
$region0: #{model_forward.1}
  #allocation0 [shape = 'u32[]', space=smem, size = 0x4, offset = 0x4, fixed_abs, tag = 'smem constant byte address 0x4 - core index']
  #allocation1 [shape = 'u32[72,128]{1,0:T(1,128)}', space=vmem, size = 0x9000, scoped, tag = 'internal scratch']
  %s0 = inlined_call_operand.vmem [shape: f32[56,128], index: 0, kind: input, shape index: {}, may-alias: {0,1}]
  %s1 = inlined_call_operand.vmem [shape: f32[56,128], index: 1, kind: output, shape index: {}, may-alias: {0,1}]
  %s2 = sld [smem:[#allocation0]]
  $region14: #{model_forward.1} parent=0
    _
  %s4 = ssub.s32 1, %s2
  %s5 = scalar_select 0, %s4, %s2
  // Predicated region
  $region2: #{model_forward.1} parent=0 // pred_check
    _
  $region3: #{model_forward.1} parent=0 // pred_check_branch
    %7 = sbr.rel (0) target = $region5
  $region4: #{model_forward.1} parent=0 // pred_region
    _
  $region5: #{model_forward.1} parent=0 // pred_fallthru
    _
  %s8 = smul.u32 0, 56
  %v9 = vlaneseq
  %v10 = vshrl.u32 %v9, 7
  %v11 = vadd.s32 %v10, 8
  %v12 = vadd.s32 %v10, 16
  %v13 = vadd.s32 %v10, 24
  %v14 = vadd.s32 %v10, 32
  %v15 = vadd.s32 %v10, 40
  %v16 = vadd.s32 %v10, 48
  %v17 = vstv %s8
  %v18 = vadd.s32 %v17, %v10
  %v19 = vadd.s32 %v17, %v11
  %v20 = vadd.s32 %v17, %v12
  %v21 = vadd.s32 %v17, %v13
  %v22 = vadd.s32 %v17, %v14
  %v23 = vadd.s32 %v17, %v15
  %v24 = vadd.s32 %v17, %v16
  %v25 = vld [vmem:[%s0] sm:$0xff]
  %v26 = vld [vmem:[%s0 + $0x8] sm:$0xff]
  %v27 = vld [vmem:[%s0 + $0x10] sm:$0xff]
  %v28 = vld [vmem:[%s0 + $0x18] sm:$0xff]
  %v29 = vld [vmem:[%s0 + $0x20] sm:$0xff]
  %v30 = vld [vmem:[%s0 + $0x28] sm:$0xff]
  %v31 = vld [vmem:[%s0 + $0x30] sm:$0xff]
  %v32 = vmul.f32 %v25, 2.0
  %v33 = vmul.f32 %v26, 2.0
  %v34 = vmul.f32 %v27, 2.0
  %v35 = vmul.f32 %v28, 2.0
  %v36 = vmul.f32 %v29, 2.0
  %v37 = vmul.f32 %v30, 2.0
  %v38 = vmul.f32 %v31, 2.0
  %v39 = vsub.f32 %v32, 1.0
  %v40 = vsub.f32 %v33, 1.0
  %v41 = vsub.f32 %v34, 1.0
  %v42 = vsub.f32 %v35, 1.0
  %v43 = vsub.f32 %v36, 1.0
  %v44 = vsub.f32 %v37, 1.0
  %v45 = vsub.f32 %v38, 1.0
  %vm46 = vcmp.lt.s32.totalorder %v18, 24
  %vm47 = vcmp.lt.s32.totalorder %v19, 24
  %vm48 = vcmp.lt.s32.totalorder %v20, 24
  %vm49 = vcmp.lt.s32.totalorder %v21, 24
  %vm50 = vcmp.lt.s32.totalorder %v22, 24
  %vm51 = vcmp.lt.s32.totalorder %v23, 24
  %vm52 = vcmp.lt.s32.totalorder %v24, 24
  %v53 = vsel %vm46, 0.22, 0.0
  %v54 = vsel %vm47, 0.22, 0.0
  %v55 = vsel %vm48, 0.22, 0.0
  %v56 = vsel %vm49, 0.22, 0.0
  %v57 = vsel %vm50, 0.22, 0.0
  %v58 = vsel %vm51, 0.22, 0.0
  %v59 = vsel %vm52, 0.22, 0.0
  %vm60 = vcmp.lt.s32.totalorder %v18, 16
  %vm61 = vcmp.lt.s32.totalorder %v19, 16
  %vm62 = vcmp.lt.s32.totalorder %v20, 16
  %vm63 = vcmp.lt.s32.totalorder %v21, 16
  %vm64 = vcmp.lt.s32.totalorder %v22, 16
  %vm65 = vcmp.lt.s32.totalorder %v23, 16
  %vm66 = vcmp.lt.s32.totalorder %v24, 16
  %v67 = vsel %vm60, 0.1, %v53
  %v68 = vsel %vm61, 0.1, %v54
  %v69 = vsel %vm62, 0.1, %v55
  %v70 = vsel %vm63, 0.1, %v56
  %v71 = vsel %vm64, 0.1, %v57
  %v72 = vsel %vm65, 0.1, %v58
  %v73 = vsel %vm66, 0.1, %v59
  %vm74 = vcmp.lt.s32.totalorder %v18, 8
  %vm75 = vcmp.lt.s32.totalorder %v19, 8
  %vm76 = vcmp.lt.s32.totalorder %v20, 8
  %vm77 = vcmp.lt.s32.totalorder %v21, 8
  %vm78 = vcmp.lt.s32.totalorder %v22, 8
  %vm79 = vcmp.lt.s32.totalorder %v23, 8
  %vm80 = vcmp.lt.s32.totalorder %v24, 8
  %v81 = vsel %vm74, 0.5, %v67
  %v82 = vsel %vm75, 0.5, %v68
  %v83 = vsel %vm76, 0.5, %v69
  %v84 = vsel %vm77, 0.5, %v70
  %v85 = vsel %vm78, 0.5, %v71
  %v86 = vsel %vm79, 0.5, %v72
  %v87 = vsel %vm80, 0.5, %v73
  %v88 = vand.u32 2147483647, %v39
  %v89 = vand.u32 2147483647, %v40
  %v90 = vand.u32 2147483647, %v41
  %v91 = vand.u32 2147483647, %v42
  %v92 = vand.u32 2147483647, %v43
  %v93 = vand.u32 2147483647, %v44
  %v94 = vand.u32 2147483647, %v45
  %vm95 = vcmp.gt.f32.partialorder %v88, %v81
  %vm96 = vcmp.gt.f32.partialorder %v89, %v82
  %vm97 = vcmp.gt.f32.partialorder %v90, %v83
  %vm98 = vcmp.gt.f32.partialorder %v91, %v84
  %vm99 = vcmp.gt.f32.partialorder %v92, %v85
  %vm100 = vcmp.gt.f32.partialorder %v93, %v86
  %vm101 = vcmp.gt.f32.partialorder %v94, %v87
  %v102 = vsel %vm95, %v39, 0.0
  %v103 = vsel %vm96, %v40, 0.0
  %v104 = vsel %vm97, %v41, 0.0
  %v105 = vsel %vm98, %v42, 0.0
  %v106 = vsel %vm99, %v43, 0.0
  %v107 = vsel %vm100, %v44, 0.0
  %v108 = vsel %vm101, %v45, 0.0
  %109 = vst [vmem:[%s1] sm:$0xff] %v102
  %110 = vst [vmem:[%s1 + $0x8] sm:$0xff] %v103
  %111 = vst [vmem:[%s1 + $0x10] sm:$0xff] %v104
  %112 = vst [vmem:[%s1 + $0x18] sm:$0xff] %v105
  %113 = vst [vmem:[%s1 + $0x20] sm:$0xff] %v106
  %114 = vst [vmem:[%s1 + $0x28] sm:$0xff] %v107
  %115 = vst [vmem:[%s1 + $0x30] sm:$0xff] %v108
  // Predicated region
  $region6: #{model_forward.1} parent=0 // pred_check
    _
  $region7: #{model_forward.1} parent=0 // pred_check_branch
    %117 = sbr.rel (0) target = $region9
  $region8: #{model_forward.1} parent=0 // pred_region
    _
  $region9: #{model_forward.1} parent=0 // pred_fallthru
    _
  // Predicated region
  $region10: #{model_forward.1} parent=0 // pred_check
    _
  $region11: #{model_forward.1} parent=0 // pred_check_branch
    %119 = sbr.rel (0) target = $region13
  $region12: #{model_forward.1} parent=0 // pred_region
    _
  $region13: #{model_forward.1} parent=0 // pred_fallthru
    _

</llo_original>
